<compile_context>
chip_gen: v6e
topology: v6e:2x2x1
jax: 0.10.0
libtpu: 0.0.40
codegen_flags: <defaults>
</compile_context>

<pallas_src>
import math

import jax
import jax.numpy as jnp
from jax.experimental import pallas as pl
from jax.experimental.pallas import tpu as pltpu


_TL_CAP = 32768                           # max L-tile width (multiple of 128)
_TARGET_TILE_BYTES = 4 * 1024 * 1024      # per-buffer tile size target
_VMEM_LIMIT_BYTES = 48 * 1024 * 1024      # v7x-safe scoped VMEM limit


def _film_mix_kernel(x_ref, wp_ref, bp_ref, o_ref):
    """out = W'(folded FiLM) @ x + b', streamed over lane-dense L tiles."""
    x = x_ref[...]                               # (B, C, TL) in x's dtype
    w = wp_ref[...].astype(x.dtype)              # (B, C, C): bf16 x -> bf16 MXU feed
    acc = jnp.einsum('boc,bcl->bol', w, x,
                     preferred_element_type=jnp.float32)   # MXU, fp32 accumulation
    acc = acc + bp_ref[...][:, :, None]          # fp32 bias (folded wmix @ shift)
    o_ref[...] = acc.astype(o_ref.dtype)


def _conditioning(t, params):
    """Fourier timestep embedding + 2-layer MLP -> ((1 + scale), shift), each (B, C)."""
    B = t.shape[0]
    t_col = t.reshape(B, 1).astype(jnp.float32)
    ang = (2.0 * math.pi) * t_col * params["freqs"]                 # (B, E//2)
    emb = jnp.concatenate([jnp.cos(ang), jnp.sin(ang)], axis=-1)    # (B, E)
    h = jax.nn.relu(emb @ params["w1"] + params["b1"])              # (B, H)
    scale1 = 1.0 + (h @ params["w2_scale"] + params["b2_scale"])    # (B, C)
    shift = h @ params["w2_shift"] + params["b2_shift"]             # (B, C)
    return scale1, shift


def _fold_film(scale1, shift, wmix):
    """Fold FiLM into the 1x1 mix: W'[b] = wmix * scale1[b], b'[b] = wmix @ shift[b]."""
    wp = wmix[None, :, :] * scale1[:, None, :]       # (B, C, C)
    bp = shift @ wmix.T                              # (B, C)
    return wp.astype(jnp.float32), bp.astype(jnp.float32)


def diffusion_forward(x, t, params, *, tl_cap=_TL_CAP,
                      target_tile_bytes=_TARGET_TILE_BYTES):
    """x: (B, C, L), t: (B,) -> (B, C, L) with x's dtype."""
    B, C, L = x.shape

    # Tiny conditioning path + FiLM folding: computed once in plain XLA.
    scale1, shift = _conditioning(t, params)
    wp, bp = _fold_film(scale1, shift, params["wmix"].astype(jnp.float32))

    # L-tile: lane-dense multiple of 128, sized by bytes so small-B*C shapes
    # still get ~MiB-scale tiles (not step-overhead bound).
    itemsize = jnp.dtype(x.dtype).itemsize
    bytes_per_col = B * C * itemsize
    tl = (target_tile_bytes // bytes_per_col) // 128 * 128
    tl = max(128, min(tl_cap, tl))
    if tl >= L:
        tl = L                       # single full-extent block (always legal)
    grid = (pl.cdiv(L, tl),)         # ragged last block handled by Pallas

    out = pl.pallas_call(
        _film_mix_kernel,
        out_shape=jax.ShapeDtypeStruct((B, C, L), x.dtype),
        grid=grid,
        in_specs=[
            pl.BlockSpec((B, C, tl), lambda l: (0, 0, l)),   # x tile (streamed)
            pl.BlockSpec((B, C, C), lambda l: (0, 0, 0)),    # folded weight (resident)
            pl.BlockSpec((B, C), lambda l: (0, 0)),          # folded bias (resident)
        ],
        out_specs=pl.BlockSpec((B, C, tl), lambda l: (0, 0, l)),
        compiler_params=pltpu.CompilerParams(
            dimension_semantics=("parallel",),
            vmem_limit_bytes=_VMEM_LIMIT_BYTES,
        ),
    )(x, wp, bp)
    return out


def diffusion_forward_ref(x, t, params):
    """Pure-JAX reference for correctness checking (fp32 internals)."""
    scale1, shift = _conditioning(t, params)
    y = x.astype(jnp.float32) * scale1[:, :, None] + shift[:, :, None]
    out = jnp.einsum('oc,bcl->bol', params["wmix"].astype(jnp.float32), y)
    return out.astype(x.dtype)


def init_params(key, C, E, H):
    ks = jax.random.split(key, 5)
    return dict(
        freqs=jax.random.normal(ks[0], (1, E // 2), dtype=jnp.float32),
        w1=jax.random.normal(ks[1], (E, H), dtype=jnp.float32) / math.sqrt(E),
        b1=jnp.zeros((1, H), dtype=jnp.float32),
        w2_scale=jax.random.normal(ks[2], (H, C), dtype=jnp.float32) / math.sqrt(H),
        b2_scale=jnp.zeros((1, C), dtype=jnp.float32),
        w2_shift=jax.random.normal(ks[3], (H, C), dtype=jnp.float32) / math.sqrt(H),
        b2_shift=jnp.zeros((1, C), dtype=jnp.float32),
        wmix=jax.random.normal(ks[4], (C, C), dtype=jnp.float32) / math.sqrt(C),
    )


if __name__ == "__main__":
    key = jax.random.PRNGKey(0)
    E, H = 32, 32   # timestep embedding dim, MLP hidden dim

    # Case 1: toy shapes implied by the module (single full-extent block).
    B, C, L = 2, 4, 16
    k_x, k_t, k_p = jax.random.split(key, 3)
    x = jax.random.normal(k_x, (B, C, L), dtype=jnp.float32)
    t = jax.random.uniform(k_t, (B,), dtype=jnp.float32)
    params = init_params(k_p, C, E, H)

    out = diffusion_forward(x, t, params)
    jax.block_until_ready(out)
    assert out.shape == (B, C, L), out.shape
    assert out.dtype == x.dtype
    ref = diffusion_forward_ref(x, t, params)
    assert jnp.allclose(out, ref, rtol=1e-4, atol=1e-4), \
        float(jnp.max(jnp.abs(out - ref)))

    # Case 2: non-multiple-of-128 length with a forced small tile, exercising
    # the multi-step grid and the ragged (masked) last block — no pad / slice.
    B2, C2, L2 = 2, 4, 300
    k_x2, k_t2 = jax.random.split(jax.random.PRNGKey(1), 2)
    x2 = jax.random.normal(k_x2, (B2, C2, L2), dtype=jnp.float32)
    t2 = jax.random.uniform(k_t2, (B2,), dtype=jnp.float32)
    out2 = diffusion_forward(x2, t2, params, tl_cap=128)
    jax.block_until_ready(out2)
    assert out2.shape == (B2, C2, L2), out2.shape
    ref2 = diffusion_forward_ref(x2, t2, params)
    assert jnp.allclose(out2, ref2, rtol=1e-4, atol=1e-4), \
        float(jnp.max(jnp.abs(out2 - ref2)))

    # Case 3: bf16 end-to-end on the hot path (halved HBM traffic); bf16 MXU
    # feed with fp32 accumulation, checked loosely against the fp32 reference.
    B3, C3, L3 = 2, 8, 1000
    k_x3, k_t3, k_p3 = jax.random.split(jax.random.PRNGKey(2), 3)
    x3 = jax.random.normal(k_x3, (B3, C3, L3), dtype=jnp.bfloat16)
    t3 = jax.random.uniform(k_t3, (B3,), dtype=jnp.float32)
    params3 = init_params(k_p3, C3, E, H)
    out3 = diffusion_forward(x3, t3, params3, tl_cap=256)
    jax.block_until_ready(out3)
    assert out3.shape == (B3, C3, L3), out3.shape
    assert out3.dtype == jnp.bfloat16
    ref3 = diffusion_forward_ref(x3, t3, params3)
    assert jnp.allclose(out3.astype(jnp.float32), ref3.astype(jnp.float32),
                        rtol=1e-1, atol=1e-1), \
        float(jnp.max(jnp.abs(out3.astype(jnp.float32) - ref3.astype(jnp.float32))))

    print("KERNEL_OK")
</pallas_src>

<mosaic_0001>
module attributes {stable_mosaic.version = 11 : i64} {
  func.func @_film_mix_kernel(%arg0: i32, %arg1: memref<2x4x16xf32, #tpu.memory_space<vmem>>, %arg2: memref<2x4x4xf32, #tpu.memory_space<vmem>>, %arg3: memref<2x4xf32, #tpu.memory_space<vmem>>, %arg4: memref<2x4x16xf32, #tpu.memory_space<vmem>>) attributes {dimension_semantics = [#tpu.dimension_semantics<parallel>], iteration_bounds = array<i64: 1>, scalar_prefetch = 0 : i64, scratch_operands = 0 : i64, tpu.core_type = #tpu.core_type<tc>, window_params = [{transform_indices = @transform_0, window_bounds = array<i64: 2, 4, 16>}, {pipeline_mode = #tpu.pipeline_mode<synchronous>, transform_indices = @transform_1, window_bounds = array<i64: 2, 4, 4>}, {pipeline_mode = #tpu.pipeline_mode<synchronous>, transform_indices = @transform_2, window_bounds = array<i64: 2, 4>}, {transform_indices = @transform_3, window_bounds = array<i64: 2, 4, 16>}]} {
    %c0 = arith.constant 0 : index
    %c0_0 = arith.constant 0 : index
    %c0_1 = arith.constant 0 : index
    %0 = vector.load %arg1[%c0, %c0_0, %c0_1] : memref<2x4x16xf32, #tpu.memory_space<vmem>>, vector<2x4x16xf32>
    %c0_2 = arith.constant 0 : index
    %c0_3 = arith.constant 0 : index
    %c0_4 = arith.constant 0 : index
    %1 = vector.load %arg2[%c0_2, %c0_3, %c0_4] : memref<2x4x4xf32, #tpu.memory_space<vmem>>, vector<2x4x4xf32>
    "tpu.trace_start"() <{level = 10 : i32, message = "boc,bcl->bol"}> : () -> ()
    %cst = arith.constant dense<0.000000e+00> : vector<2x4x16xf32>
    %2 = tpu.matmul %1, %0, %cst {dimension_numbers = #tpu.dot_dimension_numbers<[2], [1], [1], [2], [0, 0, 0, 1, 1, 2], [0], [0]>} : vector<2x4x4xf32>, vector<2x4x16xf32>, vector<2x4x16xf32> -> vector<2x4x16xf32>
    "tpu.trace_stop"() : () -> ()
    %c0_5 = arith.constant 0 : index
    %c0_6 = arith.constant 0 : index
    %3 = vector.load %arg3[%c0_5, %c0_6] : memref<2x4xf32, #tpu.memory_space<vmem>>, vector<2x4xf32>
    %4 = vector.shape_cast %3 : vector<2x4xf32> to vector<2x4x1xf32>
    %5 = vector.broadcast %4 : vector<2x4x1xf32> to vector<2x4x16xf32>
    %6 = arith.addf %2, %5 : vector<2x4x16xf32>
    %c0_7 = arith.constant 0 : index
    %c0_8 = arith.constant 0 : index
    %c0_9 = arith.constant 0 : index
    %7 = vector.load %arg4[%c0_7, %c0_8, %c0_9] : memref<2x4x16xf32, #tpu.memory_space<vmem>>, vector<2x4x16xf32>
    tpu.vector_store %arg4[%c0_7, %c0_8, %c0_9], %6 {strides = array<i32>} : memref<2x4x16xf32, #tpu.memory_space<vmem>>, vector<2x4x16xf32>,
    return
  }
  func.func @transform_0(%arg0: i32) -> (i32, i32, i32) {
    %c0_i32 = arith.constant 0 : i32
    %c0_i32_0 = arith.constant 0 : i32
    %c0_i32_1 = arith.constant 0 : i32
    return %c0_i32, %c0_i32_0, %arg0 : i32, i32, i32
  }
  func.func @transform_1(%arg0: i32) -> (i32, i32, i32) {
    %c0_i32 = arith.constant 0 : i32
    %c0_i32_0 = arith.constant 0 : i32
    %c0_i32_1 = arith.constant 0 : i32
    %c0_i32_2 = arith.constant 0 : i32
    return %c0_i32, %c0_i32_0, %c0_i32_1 : i32, i32, i32
  }
  func.func @transform_2(%arg0: i32) -> (i32, i32) {
    %c0_i32 = arith.constant 0 : i32
    %c0_i32_0 = arith.constant 0 : i32
    %c0_i32_1 = arith.constant 0 : i32
    return %c0_i32, %c0_i32_0 : i32, i32
  }
  func.func @transform_3(%arg0: i32) -> (i32, i32, i32) {
    %c0_i32 = arith.constant 0 : i32
    %c0_i32_0 = arith.constant 0 : i32
    %c0_i32_1 = arith.constant 0 : i32
    return %c0_i32, %c0_i32_0, %arg0 : i32, i32, i32
  }
}

</mosaic_0001>

<llo_original>
// kernel: tpu_custom_call.1
$region0: #{tpu_custom_call.1}
  #allocation0 [shape = 'u32[]', space=smem, size = 0x4, offset = 0x4, fixed_abs, tag = 'smem constant byte address 0x4 - core index']
  #allocation1 [shape = 'u32[144,128]{1,0:T(1,128)}', space=vmem, size = 0x12000, scoped, tag = 'internal scratch']
  %s0 = inlined_call_operand.hbm [shape: f32[2,4,16], index: 0, kind: input, shape index: {}]
  %s1 = inlined_call_operand.hbm [shape: f32[2,4,4], index: 1, kind: input, shape index: {}]
  %s2 = inlined_call_operand.vmem [shape: f32[2,4], index: 2, kind: input, shape index: {}]
  %s3 = inlined_call_operand.hbm [shape: f32[2,4,16], index: 3, kind: output, shape index: {}]
  %s4 = sld [smem:[#allocation0]]
  $region30: #{tpu_custom_call.1} parent=0
    _
  %s6 = ssub.s32 1, %s4
  %s7 = scalar_select 0, %s6, %s4
  $region1: #{tpu_custom_call.1} parent=0
    #allocation2 [shape = 'u8[4096]{0}', space=vmem, size = 0x1000, scoped, tag = 'input window, operand 0, single buffered']
    #allocation3 [shape = 's32[1]{0}', space=sflag, size = 0x4, scoped, tag = 'scoped memory for tpu_custom_call.1']
    #allocation4 [shape = 's32[1]{0}', space=sflag, size = 0x4, scoped, tag = 'scoped memory for tpu_custom_call.1']
    #allocation5 [shape = 'u8[4096]{0}', space=vmem, size = 0x1000, scoped, tag = 'input window, operand 1, single buffered']
    #allocation6 [shape = 's32[1]{0}', space=sflag, size = 0x4, scoped, tag = 'scoped memory for tpu_custom_call.1']
    #allocation7 [shape = 'u8[4096]{0}', space=vmem, size = 0x1000, scoped, tag = 'output window, operand 0, single buffered']
    %8 = vsyncpa [#allocation3], 0
    %9 = vsyncpa [#allocation6], 0
    %10 = vsyncpa [#allocation4], 0
    // Predicated region
    $region2: #{tpu_custom_call.1} parent=1 // pred_check
      _
    $region3: #{tpu_custom_call.1} parent=1 // pred_check_branch
      %12 = sbr.rel (0) target = $region5
    $region4: #{tpu_custom_call.1} parent=1 // pred_region
      %s14 = ssub.s32 128, 128
      %15 = vsyncadd [#allocation3], %s14
      %s16 = sshll.u32 [#allocation2], 4
      %s17 = int_to_ptr.vmem [resolvable:$true] %s16
      %22 = dma.hbm_to_vmem [thread:$0]  %s0, 128, %s17, [#allocation3], 64, 64, 4
    $region5: #{tpu_custom_call.1} parent=1 // pred_fallthru
      _
    // Predicated region
    $region6: #{tpu_custom_call.1} parent=1 // pred_check
      _
    $region7: #{tpu_custom_call.1} parent=1 // pred_check_branch
      %24 = sbr.rel (0) target = $region9
    $region8: #{tpu_custom_call.1} parent=1 // pred_region
      %s26 = ssub.s32 128, 128
      %27 = vsyncadd [#allocation6], %s26
      %s28 = sshll.u32 [#allocation5], 4
      %s29 = int_to_ptr.vmem [resolvable:$true] %s28
      %34 = dma.hbm_to_vmem [thread:$0]  %s1, 128, %s29, [#allocation6], 64, 64, 4
    $region9: #{tpu_custom_call.1} parent=1 // pred_fallthru
      _
    // Predicated region
    $region10: #{tpu_custom_call.1} parent=1 // pred_check
      _
    $region11: #{tpu_custom_call.1} parent=1 // pred_check_branch
      %36 = sbr.rel (0) target = $region13
    $region12: #{tpu_custom_call.1} parent=1 // pred_region
      _
    $region13: #{tpu_custom_call.1} parent=1 // pred_fallthru
      _
    // Predicated region
    $region14: #{tpu_custom_call.1} parent=1 // pred_check
      _
    $region15: #{tpu_custom_call.1} parent=1 // pred_check_branch
      %38 = sbr.rel (0) target = $region17
    $region16: #{tpu_custom_call.1} parent=1 // pred_region
      %39 = dma.done [#allocation3], 128
    $region17: #{tpu_custom_call.1} parent=1 // pred_fallthru
      _
    // Predicated region
    $region18: #{tpu_custom_call.1} parent=1 // pred_check
      _
    $region19: #{tpu_custom_call.1} parent=1 // pred_check_branch
      %41 = sbr.rel (0) target = $region21
    $region20: #{tpu_custom_call.1} parent=1 // pred_region
      %42 = dma.done [#allocation6], 128
    $region21: #{tpu_custom_call.1} parent=1 // pred_fallthru
      _
    %v43 = vld [vmem:[#allocation2] sm:$0xf]
    %v44 = vld [vmem:[#allocation2 + $0x4] sm:$0xf]
    %v45 = vld [vmem:[#allocation5] sm:$0xf]
    %v46 = vld [vmem:[#allocation5 + $0x4] sm:$0xf]
    %v47 = vld [vmem:[%s2] sm:$0x3]
    %v48 = vlaneseq
    %v49 = vshrl.u32 %v48, 7
    %v50 = vsub.s32 0, %v49
    %v51 = vrot.slane %v47, %v50
    %53 = vbcast.lane.b32.xlu0 %v51, 256
    %v54 = vpop.permute.xlu0 %53
    %v55 = vlaneseq
    %v56 = vshrl.u32 %v55, 7
    %v57 = vsub.s32 1, %v56
    %v58 = vrot.slane %v47, %v57
    %60 = vbcast.lane.b32.xlu0 %v58, 256
    %v61 = vpop.permute.xlu0 %60
    %vm62 = vcmask 31744
    %v64 = vsel %vm62, %v45, 0
    %vm66 = vcmask 1043456
    %v68 = vsel %vm66, %v43, 0
    %70 = vmatprep.subr.mxu0 0.0
    %71 = vmatpush1.msra.mxu0 0.0
    %72 = vmatprep.subr.mxu0 0.0
    %73 = vmatpush1.msra.mxu0 0.0
    %74 = vmatprep.subr.mxu0 0.0
    %75 = vmatpush1.msra.mxu0 0.0
    %76 = vmatprep.subr.mxu0 0.0
    %77 = vmatpush1.msra.mxu0 0.0
    %78 = vmatprep.subr.mxu0 0.0
    %79 = vmatpush1.msra.mxu0 0.0
    %80 = vmatprep.subr.mxu0 0.0
    %81 = vmatpush1.msra.mxu0 0.0
    %82 = vmatprep.subr.mxu0 0.0
    %83 = vmatpush1.msra.mxu0 0.0
    %84 = vmatprep.subr.mxu0 0.0
    %85 = vmatpush1.msra.mxu0 0.0
    %86 = vmatprep.subr.mxu0 0.0
    %87 = vmatpush1.msra.mxu0 0.0
    %88 = vmatprep.subr.mxu0 0.0
    %89 = vmatpush1.msra.mxu0 0.0
    %90 = vmatprep.subr.mxu0 0.0
    %91 = vmatpush1.msra.mxu0 0.0
    %92 = vmatprep.subr.mxu0 0.0
    %93 = vmatpush1.msra.mxu0 0.0
    %94 = vmatprep.subr.mxu0 0.0
    %95 = vmatpush1.msra.mxu0 0.0
    %96 = vmatprep.subr.mxu0 0.0
    %97 = vmatpush1.msra.mxu0 0.0
    %98 = vmatprep.subr.mxu0 0.0
    %99 = vmatpush1.msra.mxu0 0.0
    %100 = vmatprep.subr.mxu0 0.0
    %101 = vmatpush1.msra.mxu0 %v68
    %102 = vmatprep.subr.mxu0 0.0
    %103 = vmatpush2.msra.mxu0 0.0
    %104 = vmatprep.subr.mxu0 0.0
    %105 = vmatpush2.msra.mxu0 0.0
    %106 = vmatprep.subr.mxu0 0.0
    %107 = vmatpush2.msra.mxu0 0.0
    %108 = vmatprep.subr.mxu0 0.0
    %109 = vmatpush2.msra.mxu0 0.0
    %110 = vmatprep.subr.mxu0 0.0
    %111 = vmatpush2.msra.mxu0 0.0
    %112 = vmatprep.subr.mxu0 0.0
    %113 = vmatpush2.msra.mxu0 0.0
    %114 = vmatprep.subr.mxu0 0.0
    %115 = vmatpush2.msra.mxu0 0.0
    %116 = vmatprep.subr.mxu0 0.0
    %117 = vmatpush2.msra.mxu0 0.0
    %118 = vmatprep.subr.mxu0 0.0
    %119 = vmatpush2.msra.mxu0 0.0
    %120 = vmatprep.subr.mxu0 0.0
    %121 = vmatpush2.msra.mxu0 0.0
    %122 = vmatprep.subr.mxu0 0.0
    %123 = vmatpush2.msra.mxu0 0.0
    %124 = vmatprep.subr.mxu0 0.0
    %125 = vmatpush2.msra.mxu0 0.0
    %126 = vmatprep.subr.mxu0 0.0
    %127 = vmatpush2.msra.mxu0 0.0
    %128 = vmatprep.subr.mxu0 0.0
    %129 = vmatpush2.msra.mxu0 0.0
    %130 = vmatprep.subr.mxu0 0.0
    %131 = vmatpush2.msra.mxu0 0.0
    %132 = vmatprep.subr.mxu0 0.0
    %133 = vmatpush2.msra.mxu0 0.0
    %134 = vmatprep.mubr.f32.mxu0 0.0
    %135 = vmatmul.mubr.f32.gmra.mxu0 %v64
    %v136 = vpop.f32.mrf.mxu0
    %v137 = vadd.f32 %v54, %v136
    %v138 = vpop.f32.mrf.mxu0
    %139 = vdwg.mxu0
    %v141 = vsel %vm62, %v46, 0
    %v144 = vsel %vm66, %v44, 0
    %146 = vmatprep.subr.mxu0 0.0
    %147 = vmatpush1.msra.mxu0 0.0
    %148 = vmatprep.subr.mxu0 0.0
    %149 = vmatpush1.msra.mxu0 0.0
    %150 = vmatprep.subr.mxu0 0.0
    %151 = vmatpush1.msra.mxu0 0.0
    %152 = vmatprep.subr.mxu0 0.0
    %153 = vmatpush1.msra.mxu0 0.0
    %154 = vmatprep.subr.mxu0 0.0
    %155 = vmatpush1.msra.mxu0 0.0
    %156 = vmatprep.subr.mxu0 0.0
    %157 = vmatpush1.msra.mxu0 0.0
    %158 = vmatprep.subr.mxu0 0.0
    %159 = vmatpush1.msra.mxu0 0.0
    %160 = vmatprep.subr.mxu0 0.0
    %161 = vmatpush1.msra.mxu0 0.0
    %162 = vmatprep.subr.mxu0 0.0
    %163 = vmatpush1.msra.mxu0 0.0
    %164 = vmatprep.subr.mxu0 0.0
    %165 = vmatpush1.msra.mxu0 0.0
    %166 = vmatprep.subr.mxu0 0.0
    %167 = vmatpush1.msra.mxu0 0.0
    %168 = vmatprep.subr.mxu0 0.0
    %169 = vmatpush1.msra.mxu0 0.0
    %170 = vmatprep.subr.mxu0 0.0
    %171 = vmatpush1.msra.mxu0 0.0
    %172 = vmatprep.subr.mxu0 0.0
    %173 = vmatpush1.msra.mxu0 0.0
    %174 = vmatprep.subr.mxu0 0.0
    %175 = vmatpush1.msra.mxu0 0.0
    %176 = vmatprep.subr.mxu0 0.0
    %177 = vmatpush1.msra.mxu0 %v144
    %178 = vmatprep.subr.mxu0 0.0
    %179 = vmatpush2.msra.mxu0 0.0
    %180 = vmatprep.subr.mxu0 0.0
    %181 = vmatpush2.msra.mxu0 0.0
    %182 = vmatprep.subr.mxu0 0.0
    %183 = vmatpush2.msra.mxu0 0.0
    %184 = vmatprep.subr.mxu0 0.0
    %185 = vmatpush2.msra.mxu0 0.0
    %186 = vmatprep.subr.mxu0 0.0
    %187 = vmatpush2.msra.mxu0 0.0
    %188 = vmatprep.subr.mxu0 0.0
    %189 = vmatpush2.msra.mxu0 0.0
    %190 = vmatprep.subr.mxu0 0.0
    %191 = vmatpush2.msra.mxu0 0.0
    %192 = vmatprep.subr.mxu0 0.0
    %193 = vmatpush2.msra.mxu0 0.0
    %194 = vmatprep.subr.mxu0 0.0
    %195 = vmatpush2.msra.mxu0 0.0
    %196 = vmatprep.subr.mxu0 0.0
    %197 = vmatpush2.msra.mxu0 0.0
    %198 = vmatprep.subr.mxu0 0.0
    %199 = vmatpush2.msra.mxu0 0.0
    %200 = vmatprep.subr.mxu0 0.0
    %201 = vmatpush2.msra.mxu0 0.0
    %202 = vmatprep.subr.mxu0 0.0
    %203 = vmatpush2.msra.mxu0 0.0
    %204 = vmatprep.subr.mxu0 0.0
    %205 = vmatpush2.msra.mxu0 0.0
    %206 = vmatprep.subr.mxu0 0.0
    %207 = vmatpush2.msra.mxu0 0.0
    %208 = vmatprep.subr.mxu0 0.0
    %209 = vmatpush2.msra.mxu0 0.0
    %210 = vmatprep.mubr.f32.mxu0 0.0
    %211 = vmatmul.mubr.f32.gmra.mxu0 %v141
    %v212 = vpop.f32.mrf.mxu0
    %v213 = vadd.f32 %v61, %v212
    %v214 = vpop.f32.mrf.mxu0
    %215 = vdwg.mxu0
    %vm216 = vcmask 125952
    %217 = vst.msk [vmem:[#allocation7] sm:$0xf] %vm216, %v137
    %218 = vst.msk [vmem:[#allocation7 + $0x4] sm:$0xf] %vm216, %v213
    // Predicated region
    $region22: #{tpu_custom_call.1} parent=1 // pred_check
      _
    $region23: #{tpu_custom_call.1} parent=1 // pred_check_branch
      %220 = sbr.rel (0) target = $region25
    $region24: #{tpu_custom_call.1} parent=1 // pred_region
      %s222 = ssub.s32 128, 128
      %223 = vsyncadd [#allocation4], %s222
      %s224 = sshll.u32 [#allocation7], 4
      %s225 = int_to_ptr.vmem [resolvable:$true] %s224
      %230 = dma.vmem_to_hbm [thread:$0]  %s225, 128, %s3, [#allocation4], 64, 64, 4
    $region25: #{tpu_custom_call.1} parent=1 // pred_fallthru
      _
    // Predicated region
    $region26: #{tpu_custom_call.1} parent=1 // pred_check
      _
    $region27: #{tpu_custom_call.1} parent=1 // pred_check_branch
      %232 = sbr.rel (0) target = $region29
    $region28: #{tpu_custom_call.1} parent=1 // pred_region
      %233 = dma.done [#allocation4], 128
    $region29: #{tpu_custom_call.1} parent=1 // pred_fallthru
      _
    %234 = vsyncpa [#allocation3], 1
    %235 = vsyncpa [#allocation6], 1
    %236 = vsyncpa [#allocation4], 1

</llo_original>
